<compile_context>
chip_gen: v7x
topology: tpu7x:2x2x1
jax: 0.10.0
libtpu: 0.0.40
codegen_flags: <defaults>
</compile_context>

<pallas_src>
import functools

import jax
import jax.numpy as jnp
import numpy as np
from jax.experimental import pallas as pl
from jax.experimental.pallas import tpu as pltpu


def basic_block_kernel(x_ref, w1_ref, b1_ref, w2_ref, b2_ref, o_ref,
                       xpad_ref, midpad_ref):
    # x_ref    : (Nb, H, W*C)    un-ReLU'd input, NHWC rows with (W, C) merged
    #                            into the lane dimension.
    # w*_ref   : (3, W*C, W*C)   banded conv weights, one slab per kernel row
    #                            kh (kw taps + channel contraction + W-padding
    #                            folded into the band structure).
    # b*_ref   : (1, W*C)        bias tiled over W.
    # o_ref    : (Nb, H, W*C)    output block (lane-dense last dim).
    # xpad_ref / midpad_ref : (Nb, H+2, W*C) VMEM scratch, H-halo-padded
    #                            activations for conv1 / conv2.
    nb, hp, wc = xpad_ref.shape
    h = hp - 2
    m = nb * h

    # Zero the H halo once; scratch persists across grid steps and the interior
    # rows are fully rewritten every step (grid is sequential: "arbitrary").
    @pl.when(pl.program_id(0) == 0)
    def _zero_halo():
        xpad_ref[...] = jnp.zeros_like(xpad_ref)
        midpad_ref[...] = jnp.zeros_like(midpad_ref)

    x = x_ref[...].astype(jnp.float32)                     # (Nb, H, W*C)
    xpad_ref[:, 1:h + 1, :] = jnp.maximum(x, 0.0)          # relu(x); SAME pad in H

    def conv3x3(src_ref, w_ref, b_ref):
        # 3x3 SAME conv as 3 MXU matmuls: (Nb*H, W*C) @ (W*C, W*C), f32 acc.
        acc = jnp.zeros((m, wc), jnp.float32)
        for kh in range(3):
            rows = src_ref[:, kh:kh + h, :].reshape(m, wc)
            acc = acc + jnp.dot(rows, w_ref[kh],
                                preferred_element_type=jnp.float32)
        return acc + b_ref[...]                            # (Nb*H, W*C)

    out1 = conv3x3(xpad_ref, w1_ref, b1_ref)               # conv1(relu(x))
    midpad_ref[:, 1:h + 1, :] = jnp.maximum(out1, 0.0).reshape(nb, h, wc)
    out2 = conv3x3(midpad_ref, w2_ref, b2_ref)             # conv2(relu(conv1))

    res = out2 + x.reshape(m, wc)                          # + identity (un-ReLU'd x)
    o_ref[...] = res.reshape(nb, h, wc).astype(o_ref.dtype)


def _band_weights(w_oihw, width):
    """Fold kw taps + channel contraction + W-direction zero padding of a 3x3
    'SAME' conv into banded matrices, one per kernel row kh.

    Returns (3, W*C_in, W*C_out) with
        B[kh, (w + kw - 1)*C_in + ci, w*C_out + co] = w_oihw[co, ci, kh, kw]
    for 0 <= w + kw - 1 < W (out-of-range taps dropped == zero padding), so
    `activation_row(kh) @ B[kh]` computes one full kernel row on the MXU.
    """
    w_hwio = jnp.transpose(w_oihw, (2, 3, 1, 0))           # (3, 3, Cin, Cout)
    c_in, c_out = w_hwio.shape[2], w_hwio.shape[3]
    eye = jnp.eye(width, dtype=w_hwio.dtype)
    slabs = []
    for kh in range(3):
        slab = jnp.zeros(((width + 2) * c_in, width * c_out), w_hwio.dtype)
        for kw in range(3):
            block_diag = jnp.kron(eye, w_hwio[kh, kw])     # (W*Cin, W*Cout)
            slab = slab + jnp.pad(block_diag,
                                  ((kw * c_in, (2 - kw) * c_in), (0, 0)))
        # Drop the rows that would multiply the W-direction zero padding.
        slabs.append(slab[c_in:-c_in])
    return jnp.stack(slabs, axis=0)                        # (3, W*Cin, W*Cout)


@functools.partial(jax.jit, static_argnames=("images_per_block",))
def basic_block_forward(x_nchw, w1_oihw, b1, w2_oihw, b2, *,
                        images_per_block=None):
    n, c, h, w = x_nchw.shape
    nb = n if images_per_block is None else images_per_block
    assert n % nb == 0, "images_per_block must divide the batch"
    wc = w * c

    # NCHW -> NHWC -> (N, H, W*C).  The reshape is free in NHWC, and no padded
    # activation copy is written to HBM (padding is fused into the kernel).
    x_rows = jnp.transpose(x_nchw, (0, 2, 3, 1)).reshape(n, h, wc)

    w1b = _band_weights(w1_oihw, w)                        # (3, W*C, W*C)
    w2b = _band_weights(w2_oihw, w)
    b1r = jnp.tile(b1, w).reshape(1, wc)
    b2r = jnp.tile(b2, w).reshape(1, wc)

    out_rows = pl.pallas_call(
        basic_block_kernel,
        out_shape=jax.ShapeDtypeStruct((n, h, wc), x_nchw.dtype),
        grid_spec=pltpu.PrefetchScalarGridSpec(
            num_scalar_prefetch=0,
            grid=(n // nb,),                               # default: 1 step, whole batch
            in_specs=[
                pl.BlockSpec((nb, h, wc), lambda i: (i, 0, 0)),
                pl.BlockSpec((3, wc, wc), lambda i: (0, 0, 0)),   # resident
                pl.BlockSpec((1, wc), lambda i: (0, 0)),
                pl.BlockSpec((3, wc, wc), lambda i: (0, 0, 0)),   # resident
                pl.BlockSpec((1, wc), lambda i: (0, 0)),
            ],
            out_specs=pl.BlockSpec((nb, h, wc), lambda i: (i, 0, 0)),
            scratch_shapes=[
                pltpu.VMEM((nb, h + 2, wc), jnp.float32),  # padded relu(x)
                pltpu.VMEM((nb, h + 2, wc), jnp.float32),  # padded relu(conv1)
            ],
        ),
        # "arbitrary": steps (if any) run sequentially and reuse the
        # zero-initialized halo scratch; with the default single step this is moot.
        compiler_params=pltpu.CompilerParams(
            dimension_semantics=("arbitrary",)),
    )(x_rows, w1b, b1r, w2b, b2r)

    return jnp.transpose(out_rows.reshape(n, h, w, c), (0, 3, 1, 2))


def _xavier_uniform(key, shape):
    # shape = (C_out, C_in, kH, kW); matches nn.init.xavier_uniform_ for Conv2d
    c_out, c_in, kh, kw = shape
    fan_in = c_in * kh * kw
    fan_out = c_out * kh * kw
    bound = float(np.sqrt(6.0 / (fan_in + fan_out)))
    return jax.random.uniform(key, shape, jnp.float32, -bound, bound)


def _reference_forward(x, w1, b1, w2, b2):
    # Pure-JAX reference (NCHW, like the PyTorch module).
    def conv(hx, wgt, b):
        out = jax.lax.conv_general_dilated(
            hx, wgt, window_strides=(1, 1), padding=((1, 1), (1, 1)),
            dimension_numbers=("NCHW", "OIHW", "NCHW"))
        return out + b.reshape(1, -1, 1, 1)

    out = jax.nn.relu(x)
    out = conv(out, w1, b1)
    out = jax.nn.relu(out)
    out = conv(out, w2, b2)
    return out + x


if __name__ == "__main__":
    N, C, H, W = 2, 4, 16, 16
    key = jax.random.PRNGKey(0)
    kx, k1, k2 = jax.random.split(key, 3)

    x = jax.random.normal(kx, (N, C, H, W), jnp.float32)
    # Deterministic init mirroring apply_init_: xavier_uniform weights, zero biases.
    w1 = _xavier_uniform(k1, (C, C, 3, 3))
    b1 = jnp.zeros((C,), jnp.float32)
    w2 = _xavier_uniform(k2, (C, C, 3, 3))
    b2 = jnp.zeros((C,), jnp.float32)

    out = jax.block_until_ready(basic_block_forward(x, w1, b1, w2, b2))
    ref = jax.block_until_ready(_reference_forward(x, w1, b1, w2, b2))
    np.testing.assert_allclose(np.asarray(out), np.asarray(ref),
                               rtol=1e-4, atol=1e-4)
    print("KERNEL_OK")
</pallas_src>

<mosaic_0001>
module attributes {stable_mosaic.version = 11 : i64} {
  func.func @basic_block_kernel(%arg0: i32, %arg1: memref<2x16x64xf32, #tpu.memory_space<vmem>>, %arg2: memref<3x64x64xf32, #tpu.memory_space<vmem>>, %arg3: memref<1x64xf32, #tpu.memory_space<vmem>>, %arg4: memref<3x64x64xf32, #tpu.memory_space<vmem>>, %arg5: memref<1x64xf32, #tpu.memory_space<vmem>>, %arg6: memref<2x16x64xf32, #tpu.memory_space<vmem>>, %arg7: memref<2x18x64xf32, #tpu.memory_space<vmem>>, %arg8: memref<2x18x64xf32, #tpu.memory_space<vmem>>) attributes {dimension_semantics = [#tpu.dimension_semantics<arbitrary>], iteration_bounds = array<i64: 1>, scalar_prefetch = 0 : i64, scratch_operands = 2 : i64, tpu.core_type = #tpu.core_type<tc>, window_params = [{transform_indices = @transform_0, window_bounds = array<i64: 2, 16, 64>}, {pipeline_mode = #tpu.pipeline_mode<synchronous>, transform_indices = @transform_1, window_bounds = array<i64: 3, 64, 64>}, {pipeline_mode = #tpu.pipeline_mode<synchronous>, transform_indices = @transform_2, window_bounds = array<i64: 1, 64>}, {pipeline_mode = #tpu.pipeline_mode<synchronous>, transform_indices = @transform_3, window_bounds = array<i64: 3, 64, 64>}, {pipeline_mode = #tpu.pipeline_mode<synchronous>, transform_indices = @transform_4, window_bounds = array<i64: 1, 64>}, {transform_indices = @transform_5, window_bounds = array<i64: 2, 16, 64>}]} {
    %c0_i32 = arith.constant 0 : i32
    %0 = arith.cmpi eq, %arg0, %c0_i32 : i32
    %1 = arith.extui %0 : i1 to i32
    %c0_i32_0 = arith.constant 0 : i32
    %2 = arith.cmpi ne, %1, %c0_i32_0 : i32
    scf.if %2 {
      %cst_59 = arith.constant 0.000000e+00 : f32
      %59 = vector.broadcast %cst_59 : f32 to vector<2x18x64xf32>
      %c0_60 = arith.constant 0 : index
      %c0_61 = arith.constant 0 : index
      %c0_62 = arith.constant 0 : index
      %60 = vector.load %arg7[%c0_60, %c0_61, %c0_62] : memref<2x18x64xf32, #tpu.memory_space<vmem>>, vector<2x18x64xf32>
      tpu.vector_store %arg7[%c0_60, %c0_61, %c0_62], %59 {strides = array<i32>} : memref<2x18x64xf32, #tpu.memory_space<vmem>>, vector<2x18x64xf32>,
      %cst_63 = arith.constant 0.000000e+00 : f32
      %61 = vector.broadcast %cst_63 : f32 to vector<2x18x64xf32>
      %c0_64 = arith.constant 0 : index
      %c0_65 = arith.constant 0 : index
      %c0_66 = arith.constant 0 : index
      %62 = vector.load %arg8[%c0_64, %c0_65, %c0_66] : memref<2x18x64xf32, #tpu.memory_space<vmem>>, vector<2x18x64xf32>
      tpu.vector_store %arg8[%c0_64, %c0_65, %c0_66], %61 {strides = array<i32>} : memref<2x18x64xf32, #tpu.memory_space<vmem>>, vector<2x18x64xf32>,
    } else {
    }
    %c0 = arith.constant 0 : index
    %c0_1 = arith.constant 0 : index
    %c0_2 = arith.constant 0 : index
    %3 = vector.load %arg1[%c0, %c0_1, %c0_2] : memref<2x16x64xf32, #tpu.memory_space<vmem>>, vector<2x16x64xf32>
    %cst = arith.constant 0.000000e+00 : f32
    %4 = vector.broadcast %cst : f32 to vector<2x16x64xf32>
    %5 = arith.maximumf %3, %4 : vector<2x16x64xf32>
    %c0_3 = arith.constant 0 : index
    %c1 = arith.constant 1 : index
    %c0_4 = arith.constant 0 : index
    %6 = vector.load %arg7[%c0_3, %c1, %c0_4] : memref<2x18x64xf32, #tpu.memory_space<vmem>>, vector<2x16x64xf32>
    tpu.vector_store %arg7[%c0_3, %c1, %c0_4], %5 {strides = array<i32>} : memref<2x18x64xf32, #tpu.memory_space<vmem>>, vector<2x16x64xf32>,
    %cst_5 = arith.constant 0.000000e+00 : f32
    %7 = vector.broadcast %cst_5 : f32 to vector<32x64xf32>
    %c0_6 = arith.constant 0 : index
    %c0_7 = arith.constant 0 : index
    %c0_8 = arith.constant 0 : index
    %8 = vector.load %arg7[%c0_6, %c0_7, %c0_8] : memref<2x18x64xf32, #tpu.memory_space<vmem>>, vector<2x16x64xf32>
    %9 = vector.shape_cast %8 : vector<2x16x64xf32> to vector<32x64xf32>
    %c0_9 = arith.constant 0 : index
    %c0_10 = arith.constant 0 : index
    %c0_11 = arith.constant 0 : index
    %10 = vector.load %arg2[%c0_9, %c0_10, %c0_11] : memref<3x64x64xf32, #tpu.memory_space<vmem>>, vector<1x64x64xf32>
    %11 = vector.shape_cast %10 : vector<1x64x64xf32> to vector<64x64xf32>
    %cst_12 = arith.constant dense<0.000000e+00> : vector<32x64xf32>
    %12 = tpu.matmul %9, %11, %cst_12 {dimension_numbers = #tpu.dot_dimension_numbers<[1], [0], [0], [1], [0, 0, 1, 1], [], []>} : vector<32x64xf32>, vector<64x64xf32>, vector<32x64xf32> -> vector<32x64xf32>
    %13 = arith.addf %7, %12 : vector<32x64xf32>
    %c0_13 = arith.constant 0 : index
    %c1_14 = arith.constant 1 : index
    %c0_15 = arith.constant 0 : index
    %14 = vector.load %arg7[%c0_13, %c1_14, %c0_15] : memref<2x18x64xf32, #tpu.memory_space<vmem>>, vector<2x16x64xf32>
    %15 = vector.shape_cast %14 : vector<2x16x64xf32> to vector<32x64xf32>
    %c1_16 = arith.constant 1 : index
    %c0_17 = arith.constant 0 : index
    %c0_18 = arith.constant 0 : index
    %16 = vector.load %arg2[%c1_16, %c0_17, %c0_18] : memref<3x64x64xf32, #tpu.memory_space<vmem>>, vector<1x64x64xf32>
    %17 = vector.shape_cast %16 : vector<1x64x64xf32> to vector<64x64xf32>
    %cst_19 = arith.constant dense<0.000000e+00> : vector<32x64xf32>
    %18 = tpu.matmul %15, %17, %cst_19 {dimension_numbers = #tpu.dot_dimension_numbers<[1], [0], [0], [1], [0, 0, 1, 1], [], []>} : vector<32x64xf32>, vector<64x64xf32>, vector<32x64xf32> -> vector<32x64xf32>
    %19 = arith.addf %13, %18 : vector<32x64xf32>
    %c0_20 = arith.constant 0 : index
    %c2 = arith.constant 2 : index
    %c0_21 = arith.constant 0 : index
    %20 = vector.load %arg7[%c0_20, %c2, %c0_21] : memref<2x18x64xf32, #tpu.memory_space<vmem>>, vector<2x16x64xf32>
    %21 = vector.shape_cast %20 : vector<2x16x64xf32> to vector<32x64xf32>
    %c2_22 = arith.constant 2 : index
    %c0_23 = arith.constant 0 : index
    %c0_24 = arith.constant 0 : index
    %22 = vector.load %arg2[%c2_22, %c0_23, %c0_24] : memref<3x64x64xf32, #tpu.memory_space<vmem>>, vector<1x64x64xf32>
    %23 = vector.shape_cast %22 : vector<1x64x64xf32> to vector<64x64xf32>
    %cst_25 = arith.constant dense<0.000000e+00> : vector<32x64xf32>
    %24 = tpu.matmul %21, %23, %cst_25 {dimension_numbers = #tpu.dot_dimension_numbers<[1], [0], [0], [1], [0, 0, 1, 1], [], []>} : vector<32x64xf32>, vector<64x64xf32>, vector<32x64xf32> -> vector<32x64xf32>
    %25 = arith.addf %19, %24 : vector<32x64xf32>
    %c0_26 = arith.constant 0 : index
    %c0_27 = arith.constant 0 : index
    %26 = vector.load %arg3[%c0_26, %c0_27] : memref<1x64xf32, #tpu.memory_space<vmem>>, vector<1x64xf32>
    %27 = vector.broadcast %26 : vector<1x64xf32> to vector<32x64xf32>
    %28 = arith.addf %25, %27 : vector<32x64xf32>
    %cst_28 = arith.constant 0.000000e+00 : f32
    %29 = vector.broadcast %cst_28 : f32 to vector<32x64xf32>
    %30 = arith.maximumf %28, %29 : vector<32x64xf32>
    %31 = vector.shape_cast %30 : vector<32x64xf32> to vector<2x16x64xf32>
    %c0_29 = arith.constant 0 : index
    %c1_30 = arith.constant 1 : index
    %c0_31 = arith.constant 0 : index
    %32 = vector.load %arg8[%c0_29, %c1_30, %c0_31] : memref<2x18x64xf32, #tpu.memory_space<vmem>>, vector<2x16x64xf32>
    tpu.vector_store %arg8[%c0_29, %c1_30, %c0_31], %31 {strides = array<i32>} : memref<2x18x64xf32, #tpu.memory_space<vmem>>, vector<2x16x64xf32>,
    %cst_32 = arith.constant 0.000000e+00 : f32
    %33 = vector.broadcast %cst_32 : f32 to vector<32x64xf32>
    %c0_33 = arith.constant 0 : index
    %c0_34 = arith.constant 0 : index
    %c0_35 = arith.constant 0 : index
    %34 = vector.load %arg8[%c0_33, %c0_34, %c0_35] : memref<2x18x64xf32, #tpu.memory_space<vmem>>, vector<2x16x64xf32>
    %35 = vector.shape_cast %34 : vector<2x16x64xf32> to vector<32x64xf32>
    %c0_36 = arith.constant 0 : index
    %c0_37 = arith.constant 0 : index
    %c0_38 = arith.constant 0 : index
    %36 = vector.load %arg4[%c0_36, %c0_37, %c0_38] : memref<3x64x64xf32, #tpu.memory_space<vmem>>, vector<1x64x64xf32>
    %37 = vector.shape_cast %36 : vector<1x64x64xf32> to vector<64x64xf32>
    %cst_39 = arith.constant dense<0.000000e+00> : vector<32x64xf32>
    %38 = tpu.matmul %35, %37, %cst_39 {dimension_numbers = #tpu.dot_dimension_numbers<[1], [0], [0], [1], [0, 0, 1, 1], [], []>} : vector<32x64xf32>, vector<64x64xf32>, vector<32x64xf32> -> vector<32x64xf32>
    %39 = arith.addf %33, %38 : vector<32x64xf32>
    %c0_40 = arith.constant 0 : index
    %c1_41 = arith.constant 1 : index
    %c0_42 = arith.constant 0 : index
    %40 = vector.load %arg8[%c0_40, %c1_41, %c0_42] : memref<2x18x64xf32, #tpu.memory_space<vmem>>, vector<2x16x64xf32>
    %41 = vector.shape_cast %40 : vector<2x16x64xf32> to vector<32x64xf32>
    %c1_43 = arith.constant 1 : index
    %c0_44 = arith.constant 0 : index
    %c0_45 = arith.constant 0 : index
    %42 = vector.load %arg4[%c1_43, %c0_44, %c0_45] : memref<3x64x64xf32, #tpu.memory_space<vmem>>, vector<1x64x64xf32>
    %43 = vector.shape_cast %42 : vector<1x64x64xf32> to vector<64x64xf32>
    %cst_46 = arith.constant dense<0.000000e+00> : vector<32x64xf32>
    %44 = tpu.matmul %41, %43, %cst_46 {dimension_numbers = #tpu.dot_dimension_numbers<[1], [0], [0], [1], [0, 0, 1, 1], [], []>} : vector<32x64xf32>, vector<64x64xf32>, vector<32x64xf32> -> vector<32x64xf32>
    %45 = arith.addf %39, %44 : vector<32x64xf32>
    %c0_47 = arith.constant 0 : index
    %c2_48 = arith.constant 2 : index
    %c0_49 = arith.constant 0 : index
    %46 = vector.load %arg8[%c0_47, %c2_48, %c0_49] : memref<2x18x64xf32, #tpu.memory_space<vmem>>, vector<2x16x64xf32>
    %47 = vector.shape_cast %46 : vector<2x16x64xf32> to vector<32x64xf32>
    %c2_50 = arith.constant 2 : index
    %c0_51 = arith.constant 0 : index
    %c0_52 = arith.constant 0 : index
    %48 = vector.load %arg4[%c2_50, %c0_51, %c0_52] : memref<3x64x64xf32, #tpu.memory_space<vmem>>, vector<1x64x64xf32>
    %49 = vector.shape_cast %48 : vector<1x64x64xf32> to vector<64x64xf32>
    %cst_53 = arith.constant dense<0.000000e+00> : vector<32x64xf32>
    %50 = tpu.matmul %47, %49, %cst_53 {dimension_numbers = #tpu.dot_dimension_numbers<[1], [0], [0], [1], [0, 0, 1, 1], [], []>} : vector<32x64xf32>, vector<64x64xf32>, vector<32x64xf32> -> vector<32x64xf32>
    %51 = arith.addf %45, %50 : vector<32x64xf32>
    %c0_54 = arith.constant 0 : index
    %c0_55 = arith.constant 0 : index
    %52 = vector.load %arg5[%c0_54, %c0_55] : memref<1x64xf32, #tpu.memory_space<vmem>>, vector<1x64xf32>
    %53 = vector.broadcast %52 : vector<1x64xf32> to vector<32x64xf32>
    %54 = arith.addf %51, %53 : vector<32x64xf32>
    %55 = vector.shape_cast %3 : vector<2x16x64xf32> to vector<32x64xf32>
    %56 = arith.addf %54, %55 : vector<32x64xf32>
    %57 = vector.shape_cast %56 : vector<32x64xf32> to vector<2x16x64xf32>
    %c0_56 = arith.constant 0 : index
    %c0_57 = arith.constant 0 : index
    %c0_58 = arith.constant 0 : index
    %58 = vector.load %arg6[%c0_56, %c0_57, %c0_58] : memref<2x16x64xf32, #tpu.memory_space<vmem>>, vector<2x16x64xf32>
    tpu.vector_store %arg6[%c0_56, %c0_57, %c0_58], %57 {strides = array<i32>} : memref<2x16x64xf32, #tpu.memory_space<vmem>>, vector<2x16x64xf32>,
    return
  }
  func.func @transform_0(%arg0: i32) -> (i32, i32, i32) {
    %c0_i32 = arith.constant 0 : i32
    %c0_i32_0 = arith.constant 0 : i32
    %c0_i32_1 = arith.constant 0 : i32
    return %arg0, %c0_i32, %c0_i32_0 : i32, i32, i32
  }
  func.func @transform_1(%arg0: i32) -> (i32, i32, i32) {
    %c0_i32 = arith.constant 0 : i32
    %c0_i32_0 = arith.constant 0 : i32
    %c0_i32_1 = arith.constant 0 : i32
    %c0_i32_2 = arith.constant 0 : i32
    return %c0_i32, %c0_i32_0, %c0_i32_1 : i32, i32, i32
  }
  func.func @transform_2(%arg0: i32) -> (i32, i32) {
    %c0_i32 = arith.constant 0 : i32
    %c0_i32_0 = arith.constant 0 : i32
    %c0_i32_1 = arith.constant 0 : i32
    return %c0_i32, %c0_i32_0 : i32, i32
  }
  func.func @transform_3(%arg0: i32) -> (i32, i32, i32) {
    %c0_i32 = arith.constant 0 : i32
    %c0_i32_0 = arith.constant 0 : i32
    %c0_i32_1 = arith.constant 0 : i32
    %c0_i32_2 = arith.constant 0 : i32
    return %c0_i32, %c0_i32_0, %c0_i32_1 : i32, i32, i32
  }
  func.func @transform_4(%arg0: i32) -> (i32, i32) {
    %c0_i32 = arith.constant 0 : i32
    %c0_i32_0 = arith.constant 0 : i32
    %c0_i32_1 = arith.constant 0 : i32
    return %c0_i32, %c0_i32_0 : i32, i32
  }
  func.func @transform_5(%arg0: i32) -> (i32, i32, i32) {
    %c0_i32 = arith.constant 0 : i32
    %c0_i32_0 = arith.constant 0 : i32
    %c0_i32_1 = arith.constant 0 : i32
    return %arg0, %c0_i32, %c0_i32_0 : i32, i32, i32
  }
}

</mosaic_0001>

<llo_original>
// kernel: tile.13
$region0: #{tile.13}
  #allocation0 [shape = 's32[1]{0}', space=sflag, size = 0x4, scoped, tag = 'scoped memory for tile.13']
  %s0 = inlined_call_operand.vmem [shape: f32[4], index: 0, kind: input, shape index: {}]
  %s1 = inlined_call_operand.vmem [shape: f32[16,4], index: 1, kind: output, shape index: {}]
  // Predicated region
  $region2: #{tile.13} parent=0 // pred_check
    _
  $region3: #{tile.13} parent=0 // pred_check_branch
    %3 = sbr.rel (0) target = $region5
  $region4: #{tile.13} parent=0 // pred_region
    _
  $region5: #{tile.13} parent=0 // pred_fallthru
    _
  %v4 = vld [vmem:[%s0] ss:$0 sm:$0xff]
  %5 = vst [vmem:[%s1] sm:$0xff] %v4
  %s6 = scalar_lea.vmem %s1, 8
  %7 = vst [vmem:[%s6] sm:$0xff] %v4

// kernel: tile.14
$region0: #{tile.14}
  %s0 = inlined_call_operand.vmem [shape: f32[16,4], index: 0, kind: input, shape index: {}]
  %s1 = inlined_call_operand.vmem [shape: f32[1,64], index: 1, kind: output, shape index: {}]
  $region1: #{tile.14} parent=0
    #allocation0 [shape = 'u8[4096]{0}', space=vmem, size = 0x1000, scoped, tag = 'scoped mem for output reshape']
    %v2 = vld [vmem:[%s0] sm:$0x1]
    %vm3 = vcmask 31744
    %4 = vst.msk [vmem:[#allocation0] sm:$0x1] %vm3, %v2
    %s5 = scalar_lea.vmem %s0, 15
    %v6 = vld [vmem:[%s5] sm:$0x1]
    %7 = vrot.lane.b32.xlu0 %v6, 60
    %v8 = vpop.permute.xlu0 %7
    %vm9 = vcmask 523744
    %10 = vst.msk [vmem:[#allocation0] sm:$0x1] %vm9, %v8
    %s11 = scalar_lea.vmem %s0, 14
    %v12 = vld [vmem:[%s11] sm:$0x1]
    %13 = vrot.lane.b32.xlu0 %v12, 56
    %v14 = vpop.permute.xlu0 %13
    %vm15 = vcmask 490944
    %16 = vst.msk [vmem:[#allocation0] sm:$0x1] %vm15, %v14
    %s17 = scalar_lea.vmem %s0, 13
    %v18 = vld [vmem:[%s17] sm:$0x1]
    %19 = vrot.lane.b32.xlu0 %v18, 52
    %v20 = vpop.permute.xlu0 %19
    %vm21 = vcmask 458144
    %22 = vst.msk [vmem:[#allocation0] sm:$0x1] %vm21, %v20
    %s23 = scalar_lea.vmem %s0, 12
    %v24 = vld [vmem:[%s23] sm:$0x1]
    %25 = vrot.lane.b32.xlu0 %v24, 48
    %v26 = vpop.permute.xlu0 %25
    %vm27 = vcmask 425344
    %28 = vst.msk [vmem:[#allocation0] sm:$0x1] %vm27, %v26
    %s29 = scalar_lea.vmem %s0, 11
    %v30 = vld [vmem:[%s29] sm:$0x1]
    %31 = vrot.lane.b32.xlu0 %v30, 44
    %v32 = vpop.permute.xlu0 %31
    %vm33 = vcmask 392544
    %34 = vst.msk [vmem:[#allocation0] sm:$0x1] %vm33, %v32
    %s35 = scalar_lea.vmem %s0, 10
    %v36 = vld [vmem:[%s35] sm:$0x1]
    %37 = vrot.lane.b32.xlu0 %v36, 40
    %v38 = vpop.permute.xlu0 %37
    %vm39 = vcmask 359744
    %40 = vst.msk [vmem:[#allocation0] sm:$0x1] %vm39, %v38
    %s41 = scalar_lea.vmem %s0, 9
    %v42 = vld [vmem:[%s41] sm:$0x1]
    %43 = vrot.lane.b32.xlu0 %v42, 36
    %v44 = vpop.permute.xlu0 %43
    %vm45 = vcmask 326944
    %46 = vst.msk [vmem:[#allocation0] sm:$0x1] %vm45, %v44
    %s47 = scalar_lea.vmem %s0, 8
    %v48 = vld [vmem:[%s47] sm:$0x1]
    %49 = vrot.lane.b32.xlu0 %v48, 32
    %v50 = vpop.permute.xlu0 %49
    %vm51 = vcmask 294144
    %52 = vst.msk [vmem:[#allocation0] sm:$0x1] %vm51, %v50
    %s53 = scalar_lea.vmem %s0, 7
    %v54 = vld [vmem:[%s53] sm:$0x1]
    %55 = vrot.lane.b32.xlu0 %v54, 28
    %v56 = vpop.permute.xlu0 %55
    %vm57 = vcmask 261344
    %58 = vst.msk [vmem:[#allocation0] sm:$0x1] %vm57, %v56
    %s59 = scalar_lea.vmem %s0, 6
    %v60 = vld [vmem:[%s59] sm:$0x1]
    %61 = vrot.lane.b32.xlu0 %v60, 24
    %v62 = vpop.permute.xlu0 %61
    %vm63 = vcmask 228544
    %64 = vst.msk [vmem:[#allocation0] sm:$0x1] %vm63, %v62
    %s65 = scalar_lea.vmem %s0, 5
    %v66 = vld [vmem:[%s65] sm:$0x1]
    %67 = vrot.lane.b32.xlu0 %v66, 20
    %v68 = vpop.permute.xlu0 %67
    %vm69 = vcmask 195744
    %70 = vst.msk [vmem:[#allocation0] sm:$0x1] %vm69, %v68
    %s71 = scalar_lea.vmem %s0, 4
    %v72 = vld [vmem:[%s71] sm:$0x1]
    %73 = vrot.lane.b32.xlu0 %v72, 16
    %v74 = vpop.permute.xlu0 %73
    %vm75 = vcmask 162944
    %76 = vst.msk [vmem:[#allocation0] sm:$0x1] %vm75, %v74
    %s77 = scalar_lea.vmem %s0, 3
    %v78 = vld [vmem:[%s77] sm:$0x1]
    %79 = vrot.lane.b32.xlu0 %v78, 12
    %v80 = vpop.permute.xlu0 %79
    %vm81 = vcmask 130144
    %82 = vst.msk [vmem:[#allocation0] sm:$0x1] %vm81, %v80
    %s83 = scalar_lea.vmem %s0, 2
    %v84 = vld [vmem:[%s83] sm:$0x1]
    %85 = vrot.lane.b32.xlu0 %v84, 8
    %v86 = vpop.permute.xlu0 %85
    %vm87 = vcmask 97344
    %88 = vst.msk [vmem:[#allocation0] sm:$0x1] %vm87, %v86
    %s89 = scalar_lea.vmem %s0, 1
    %v90 = vld [vmem:[%s89] sm:$0x1]
    %91 = vrot.lane.b32.xlu0 %v90, 4
    %v92 = vpop.permute.xlu0 %91
    %vm93 = vcmask 64544
    %94 = vst.msk [vmem:[#allocation0] sm:$0x1] %vm93, %v92
    %s96 = sshllo.u32 0, 1
    %v98 = vld [vmem:[#allocation0] sm:%s96]
    %s99 = sshllo.u32 0, 1
    %100 = vst [vmem:[%s1] sm:%s99] %v98

// kernel: basic_block_forward.1
$region0: #{basic_block_forward.1}
  #allocation0 [shape = 'u32[]', space=smem, size = 0x4, offset = 0x4, fixed_abs, tag = 'smem constant byte address 0x4 - core index']
  #allocation1 [shape = 'u32[144,128]{1,0:T(1,128)}', space=vmem, size = 0x12000, scoped, tag = 'internal scratch']
  #allocation2 [shape = 'f32[2,18,64]{2,1,0:T(8,128)}', space=vmem, size = 0x6000, scoped, tag = 'scratch operand']
  #allocation3 [shape = 'f32[2,18,64]{2,1,0:T(8,128)}', space=vmem, size = 0x6000, scoped, tag = 'scratch operand']
  %s0 = inlined_call_operand.vmem [shape: f32[2,16,64], index: 0, kind: input, shape index: {}]
  %s1 = inlined_call_operand.vmem [shape: f32[3,64,64], index: 1, kind: input, shape index: {}]
  %s2 = inlined_call_operand.vmem [shape: f32[1,64], index: 2, kind: input, shape index: {}]
  %s3 = inlined_call_operand.vmem [shape: f32[3,64,64], index: 3, kind: input, shape index: {}]
  %s4 = inlined_call_operand.vmem [shape: f32[1,64], index: 4, kind: input, shape index: {}]
  %s5 = inlined_call_operand.vmem [shape: f32[2,16,64], index: 5, kind: output, shape index: {}]
  %s6 = sld [smem:[#allocation0]]
  $region34: #{basic_block_forward.1} parent=0
    _
  %s8 = ssub.s32 1, %s6
  %s9 = scalar_select 0, %s8, %s6
  // Predicated region
  $region2: #{basic_block_forward.1} parent=0 // pred_check
    _
  $region3: #{basic_block_forward.1} parent=0 // pred_check_branch
    %11 = sbr.rel (0) target = $region5
  $region4: #{basic_block_forward.1} parent=0 // pred_region
    _
  $region5: #{basic_block_forward.1} parent=0 // pred_fallthru
    _
  // Predicated region
  $region6: #{basic_block_forward.1} parent=0 // pred_check
    _
  $region7: #{basic_block_forward.1} parent=0 // pred_check_branch
    %13 = sbr.rel (0) target = $region9
  $region8: #{basic_block_forward.1} parent=0 // pred_region
    _
  $region9: #{basic_block_forward.1} parent=0 // pred_fallthru
    _
  // Predicated region
  $region10: #{basic_block_forward.1} parent=0 // pred_check
    _
  $region11: #{basic_block_forward.1} parent=0 // pred_check_branch
    %15 = sbr.rel (0) target = $region13
  $region12: #{basic_block_forward.1} parent=0 // pred_region
    _
  $region13: #{basic_block_forward.1} parent=0 // pred_fallthru
    _
  // Predicated region
  $region14: #{basic_block_forward.1} parent=0 // pred_check
    _
  $region15: #{basic_block_forward.1} parent=0 // pred_check_branch
    %17 = sbr.rel (0) target = $region17
  $region16: #{basic_block_forward.1} parent=0 // pred_region
    _
  $region17: #{basic_block_forward.1} parent=0 // pred_fallthru
    _
  // Predicated region
  $region18: #{basic_block_forward.1} parent=0 // pred_check
    _
  $region19: #{basic_block_forward.1} parent=0 // pred_check_branch
    %19 = sbr.rel (0) target = $region21
  $region20: #{basic_block_forward.1} parent=0 // pred_region
    _
  $region21: #{basic_block_forward.1} parent=0 // pred_fallthru
    _
  %p20 = scmp.eq.s32.totalorder 0, 0
  // Predicated region
  $region22: #{basic_block_forward.1} parent=0 // pred_check
    %p21 = pneg %p20
  $region23: #{basic_block_forward.1} parent=0 // pred_check_branch
    %23 = sbr.rel (%p21) target = $region25
  $region24: #{basic_block_forward.1} parent=0 // pred_region
    %vm24 = vcmask 523264
    %25 = vst.msk [vmem:[#allocation2] sm:$0xff] %vm24, 0.0
    %26 = vst.msk [vmem:[#allocation2 + $0x8] sm:$0xff] %vm24, 0.0
    %vm27 = vcmask 517120
    %28 = vst.msk [vmem:[#allocation2 + $0x10] sm:$0x3] %vm27, 0.0
    %29 = vst.msk [vmem:[#allocation2 + $0x18] sm:$0xff] %vm24, 0.0
    %30 = vst.msk [vmem:[#allocation2 + $0x20] sm:$0xff] %vm24, 0.0
    %31 = vst.msk [vmem:[#allocation2 + $0x28] sm:$0x3] %vm27, 0.0
    %32 = vst.msk [vmem:[#allocation3] sm:$0xff] %vm24, 0.0
    %33 = vst.msk [vmem:[#allocation3 + $0x8] sm:$0xff] %vm24, 0.0
    %34 = vst.msk [vmem:[#allocation3 + $0x10] sm:$0x3] %vm27, 0.0
    %35 = vst.msk [vmem:[#allocation3 + $0x18] sm:$0xff] %vm24, 0.0
    %36 = vst.msk [vmem:[#allocation3 + $0x20] sm:$0xff] %vm24, 0.0
    %37 = vst.msk [vmem:[#allocation3 + $0x28] sm:$0x3] %vm27, 0.0
  $region25: #{basic_block_forward.1} parent=0 // pred_fallthru
    _
  %v38 = vld [vmem:[%s0] sm:$0xff]
  %v39 = vld [vmem:[%s0 + $0x8] sm:$0xff]
  %v40 = vld [vmem:[%s0 + $0x10] sm:$0xff]
  %v41 = vld [vmem:[%s0 + $0x18] sm:$0xff]
  %v42 = vmax.f32 %v38, 0.0
  %v43 = vmax.f32 %v39, 0.0
  %v44 = vmax.f32 %v40, 0.0
  %v45 = vmax.f32 %v41, 0.0
  %vm46 = vcmask 523264
  %47 = vst.msk [vmem:[#allocation2 + $0x1] sm:$0xff] %vm46, %v42
  %48 = vst.msk [vmem:[#allocation2 + $0x9] sm:$0xff] %vm46, %v43
  %49 = vst.msk [vmem:[#allocation2 + $0x19] sm:$0xff] %vm46, %v44
  %50 = vst.msk [vmem:[#allocation2 + $0x21] sm:$0xff] %vm46, %v45
  %v51 = vld [vmem:[#allocation2] sm:$0xff]
  %v52 = vld [vmem:[#allocation2 + $0x8] sm:$0xff]
  %v53 = vld [vmem:[#allocation2 + $0x18] sm:$0xff]
  %v54 = vld [vmem:[#allocation2 + $0x20] sm:$0xff]
  %v55 = vld [vmem:[%s1] sm:$0xff]
  %v56 = vld [vmem:[%s1 + $0x8] sm:$0xff]
  %v57 = vld [vmem:[%s1 + $0x10] sm:$0xff]
  %v58 = vld [vmem:[%s1 + $0x18] sm:$0xff]
  %v59 = vld [vmem:[%s1 + $0x20] sm:$0xff]
  %v60 = vld [vmem:[%s1 + $0x28] sm:$0xff]
  %v61 = vld [vmem:[%s1 + $0x30] sm:$0xff]
  %v62 = vld [vmem:[%s1 + $0x38] sm:$0xff]
  %v63 = vld [vmem:[#allocation2 + $0x1] sm:$0xff]
  %v64 = vld [vmem:[#allocation2 + $0x9] sm:$0xff]
  %v65 = vld [vmem:[#allocation2 + $0x19] sm:$0xff]
  %v66 = vld [vmem:[#allocation2 + $0x21] sm:$0xff]
  %s67 = scalar_lea.vmem %s1, 64
  %v68 = vld [vmem:[%s67] sm:$0xff]
  %v69 = vld [vmem:[%s67 + $0x8] sm:$0xff]
  %v70 = vld [vmem:[%s67 + $0x10] sm:$0xff]
  %v71 = vld [vmem:[%s67 + $0x18] sm:$0xff]
  %v72 = vld [vmem:[%s67 + $0x20] sm:$0xff]
  %v73 = vld [vmem:[%s67 + $0x28] sm:$0xff]
  %v74 = vld [vmem:[%s67 + $0x30] sm:$0xff]
  %v75 = vld [vmem:[%s67 + $0x38] sm:$0xff]
  %v77 = vsel %vm46, %v63, 0
  %v80 = vsel %vm46, %v64, 0
  %v83 = vsel %vm46, %v65, 0
  %v86 = vsel %vm46, %v66, 0
  %88 = vmatprep.subr.mxu0 0.0
  %89 = vmatpush1.msra.mxu0 %v68
  %90 = vmatprep.subr.mxu0 0.0
  %91 = vmatpush1.msra.mxu0 %v69
  %92 = vmatprep.subr.mxu0 0.0
  %93 = vmatpush1.msra.mxu0 %v70
  %94 = vmatprep.subr.mxu0 0.0
  %95 = vmatpush1.msra.mxu0 %v71
  %96 = vmatprep.subr.mxu0 0.0
  %97 = vmatpush1.msra.mxu0 %v72
  %98 = vmatprep.subr.mxu0 0.0
  %99 = vmatpush1.msra.mxu0 %v73
  %100 = vmatprep.subr.mxu0 0.0
  %101 = vmatpush1.msra.mxu0 %v74
  %102 = vmatprep.subr.mxu0 0.0
  %103 = vmatpush1.msra.mxu0 %v75
  %104 = vmatprep.subr.mxu0 0.0
  %105 = vmatpush1.msra.mxu0 0.0
  %106 = vmatprep.subr.mxu0 0.0
  %107 = vmatpush1.msra.mxu0 0.0
  %108 = vmatprep.subr.mxu0 0.0
  %109 = vmatpush1.msra.mxu0 0.0
  %110 = vmatprep.subr.mxu0 0.0
  %111 = vmatpush1.msra.mxu0 0.0
  %112 = vmatprep.subr.mxu0 0.0
  %113 = vmatpush1.msra.mxu0 0.0
  %114 = vmatprep.subr.mxu0 0.0
  %115 = vmatpush1.msra.mxu0 0.0
  %116 = vmatprep.subr.mxu0 0.0
  %117 = vmatpush1.msra.mxu0 0.0
  %118 = vmatprep.subr.mxu0 0.0
  %119 = vmatpush1.msra.mxu0 0.0
  %120 = vmatprep.subr.mxu0 0.0
  %121 = vmatpush1.msra.mxu0 0.0
  %122 = vmatprep.subr.mxu0 0.0
  %123 = vmatpush1.msra.mxu0 0.0
  %124 = vmatprep.subr.mxu0 0.0
  %125 = vmatpush1.msra.mxu0 0.0
  %126 = vmatprep.subr.mxu0 0.0
  %127 = vmatpush1.msra.mxu0 0.0
  %128 = vmatprep.subr.mxu0 0.0
  %129 = vmatpush1.msra.mxu0 0.0
  %130 = vmatprep.subr.mxu0 0.0
  %131 = vmatpush1.msra.mxu0 0.0
  %132 = vmatprep.subr.mxu0 0.0
  %133 = vmatpush1.msra.mxu0 0.0
  %134 = vmatprep.subr.mxu0 0.0
  %135 = vmatpush1.msra.mxu0 0.0
  %136 = vmatprep.subr.mxu0 0.0
  %137 = vmatpush1.msra.mxu0 0.0
  %138 = vmatprep.subr.mxu0 0.0
  %139 = vmatpush1.msra.mxu0 0.0
  %140 = vmatprep.subr.mxu0 0.0
  %141 = vmatpush1.msra.mxu0 0.0
  %142 = vmatprep.subr.mxu0 0.0
  %143 = vmatpush1.msra.mxu0 0.0
  %144 = vmatprep.subr.mxu0 0.0
  %145 = vmatpush1.msra.mxu0 0.0
  %146 = vmatprep.subr.mxu0 0.0
  %147 = vmatpush1.msra.mxu0 0.0
  %148 = vmatprep.subr.mxu0 0.0
  %149 = vmatpush1.msra.mxu0 0.0
  %150 = vmatprep.subr.mxu0 0.0
  %151 = vmatpush1.msra.mxu0 0.0
  %152 = vmatprep.mubr.f32.mxu0 0.0
  %153 = vmatmul.mubr.f32.gmra.mrb[0].mxu0 %v77
  %v154 = vpop.f32.mrb[0].mxu0
  %v155 = vadd.f32 0.0, %v154
  %v156 = vpop.f32.mrb[0].mxu0
  %157 = vmatprep.mubr.f32.mxu0 0.0
  %158 = vmatmul.mubr.f32.gmra.mrb[0].mxu0 %v80
  %v159 = vpop.f32.mrb[0].mxu0
  %v160 = vadd.f32 0.0, %v159
  %v161 = vpop.f32.mrb[0].mxu0
  %162 = vmatprep.mubr.f32.mxu0 0.0
  %163 = vmatmul.mubr.f32.gmra.mrb[0].mxu0 %v83
  %v164 = vpop.f32.mrb[0].mxu0
  %v165 = vadd.f32 0.0, %v164
  %v166 = vpop.f32.mrb[0].mxu0
  %167 = vmatprep.mubr.f32.mxu0 0.0
  %168 = vmatmul.mubr.f32.gmra.mrb[0].mxu0 %v86
  %v169 = vpop.f32.mrb[0].mxu0
  %v170 = vadd.f32 0.0, %v169
  %v171 = vpop.f32.mrb[0].mxu0
  %172 = vdwg.mxu0
  %v174 = vsel %vm46, %v51, 0
  %v177 = vsel %vm46, %v52, 0
  %v180 = vsel %vm46, %v53, 0
  %v183 = vsel %vm46, %v54, 0
  %185 = vmatprep.subr.mxu0 0.0
  %186 = vmatpush1.msra.mxu0 %v55
  %187 = vmatprep.subr.mxu0 0.0
  %188 = vmatpush1.msra.mxu0 %v56
  %189 = vmatprep.subr.mxu0 0.0
  %190 = vmatpush1.msra.mxu0 %v57
  %191 = vmatprep.subr.mxu0 0.0
  %192 = vmatpush1.msra.mxu0 %v58
  %193 = vmatprep.subr.mxu0 0.0
  %194 = vmatpush1.msra.mxu0 %v59
  %195 = vmatprep.subr.mxu0 0.0
  %196 = vmatpush1.msra.mxu0 %v60
  %197 = vmatprep.subr.mxu0 0.0
  %198 = vmatpush1.msra.mxu0 %v61
  %199 = vmatprep.subr.mxu0 0.0
  %200 = vmatpush1.msra.mxu0 %v62
  %201 = vmatprep.subr.mxu0 0.0
  %202 = vmatpush1.msra.mxu0 0.0
  %203 = vmatprep.subr.mxu0 0.0
  %204 = vmatpush1.msra.mxu0 0.0
  %205 = vmatprep.subr.mxu0 0.0
  %206 = vmatpush1.msra.mxu0 0.0
  %207 = vmatprep.subr.mxu0 0.0
  %208 = vmatpush1.msra.mxu0 0.0
  %209 = vmatprep.subr.mxu0 0.0
  %210 = vmatpush1.msra.mxu0 0.0
  %211 = vmatprep.subr.mxu0 0.0
  %212 = vmatpush1.msra.mxu0 0.0
  %213 = vmatprep.subr.mxu0 0.0
  %214 = vmatpush1.msra.mxu0 0.0
  %215 = vmatprep.subr.mxu0 0.0
  %216 = vmatpush1.msra.mxu0 0.0
  %217 = vmatprep.subr.mxu0 0.0
  %218 = vmatpush1.msra.mxu0 0.0
  %219 = vmatprep.subr.mxu0 0.0
  %220 = vmatpush1.msra.mxu0 0.0
  %221 = vmatprep.subr.mxu0 0.0
  %222 = vmatpush1.msra.mxu0 0.0
  %223 = vmatprep.subr.mxu0 0.0
  %224 = vmatpush1.msra.mxu0 0.0
  %225 = vmatprep.subr.mxu0 0.0
  %226 = vmatpush1.msra.mxu0 0.0
  %227 = vmatprep.subr.mxu0 0.0
  %228 = vmatpush1.msra.mxu0 0.0
  %229 = vmatprep.subr.mxu0 0.0
  %230 = vmatpush1.msra.mxu0 0.0
  %231 = vmatprep.subr.mxu0 0.0
  %232 = vmatpush1.msra.mxu0 0.0
  %233 = vmatprep.subr.mxu0 0.0
  %234 = vmatpush1.msra.mxu0 0.0
  %235 = vmatprep.subr.mxu0 0.0
  %236 = vmatpush1.msra.mxu0 0.0
  %237 = vmatprep.subr.mxu0 0.0
  %238 = vmatpush1.msra.mxu0 0.0
  %239 = vmatprep.subr.mxu0 0.0
  %240 = vmatpush1.msra.mxu0 0.0
  %241 = vmatprep.subr.mxu0 0.0
  %242 = vmatpush1.msra.mxu0 0.0
  %243 = vmatprep.subr.mxu0 0.0
  %244 = vmatpush1.msra.mxu0 0.0
  %245 = vmatprep.subr.mxu0 0.0
  %246 = vmatpush1.msra.mxu0 0.0
  %247 = vmatprep.subr.mxu0 0.0
  %248 = vmatpush1.msra.mxu0 0.0
  %249 = vmatprep.mubr.f32.mxu0 0.0
  %250 = vmatmul.mubr.f32.gmra.mrb[0].mxu0 %v174
  %v251 = vpop.f32.mrb[0].mxu0
  %v252 = vadd.f32 %v155, %v251
  %v253 = vpop.f32.mrb[0].mxu0
  %254 = vmatprep.mubr.f32.mxu0 0.0
  %255 = vmatmul.mubr.f32.gmra.mrb[0].mxu0 %v177
  %v256 = vpop.f32.mrb[0].mxu0
  %v257 = vadd.f32 %v160, %v256
  %v258 = vpop.f32.mrb[0].mxu0
  %259 = vmatprep.mubr.f32.mxu0 0.0
  %260 = vmatmul.mubr.f32.gmra.mrb[0].mxu0 %v180
  %v261 = vpop.f32.mrb[0].mxu0
  %v262 = vadd.f32 %v165, %v261
  %v263 = vpop.f32.mrb[0].mxu0
  %264 = vmatprep.mubr.f32.mxu0 0.0
  %265 = vmatmul.mubr.f32.gmra.mrb[0].mxu0 %v183
  %v266 = vpop.f32.mrb[0].mxu0
  %v267 = vadd.f32 %v170, %v266
  %v268 = vpop.f32.mrb[0].mxu0
  %269 = vdwg.mxu0
  %v270 = vld [vmem:[#allocation2 + $0x2] sm:$0xff]
  %v271 = vld [vmem:[#allocation2 + $0xa] sm:$0xff]
  %v272 = vld [vmem:[#allocation2 + $0x1a] sm:$0xff]
  %v273 = vld [vmem:[#allocation2 + $0x22] sm:$0xff]
  %s274 = scalar_lea.vmem %s1, 128
  %v275 = vld [vmem:[%s274] sm:$0xff]
  %v276 = vld [vmem:[%s274 + $0x8] sm:$0xff]
  %v277 = vld [vmem:[%s274 + $0x10] sm:$0xff]
  %v278 = vld [vmem:[%s274 + $0x18] sm:$0xff]
  %v279 = vld [vmem:[%s274 + $0x20] sm:$0xff]
  %v280 = vld [vmem:[%s274 + $0x28] sm:$0xff]
  %v281 = vld [vmem:[%s274 + $0x30] sm:$0xff]
  %v282 = vld [vmem:[%s274 + $0x38] sm:$0xff]
  %v284 = vsel %vm46, %v270, 0
  %v287 = vsel %vm46, %v271, 0
  %v290 = vsel %vm46, %v272, 0
  %v293 = vsel %vm46, %v273, 0
  %295 = vmatprep.subr.mxu0 0.0
  %296 = vmatpush1.msra.mxu0 %v275
  %297 = vmatprep.subr.mxu0 0.0
  %298 = vmatpush1.msra.mxu0 %v276
  %299 = vmatprep.subr.mxu0 0.0
  %300 = vmatpush1.msra.mxu0 %v277
  %301 = vmatprep.subr.mxu0 0.0
  %302 = vmatpush1.msra.mxu0 %v278
  %303 = vmatprep.subr.mxu0 0.0
  %304 = vmatpush1.msra.mxu0 %v279
  %305 = vmatprep.subr.mxu0 0.0
  %306 = vmatpush1.msra.mxu0 %v280
  %307 = vmatprep.subr.mxu0 0.0
  %308 = vmatpush1.msra.mxu0 %v281
  %309 = vmatprep.subr.mxu0 0.0
  %310 = vmatpush1.msra.mxu0 %v282
  %311 = vmatprep.subr.mxu0 0.0
  %312 = vmatpush1.msra.mxu0 0.0
  %313 = vmatprep.subr.mxu0 0.0
  %314 = vmatpush1.msra.mxu0 0.0
  %315 = vmatprep.subr.mxu0 0.0
  %316 = vmatpush1.msra.mxu0 0.0
  %317 = vmatprep.subr.mxu0 0.0
  %318 = vmatpush1.msra.mxu0 0.0
  %319 = vmatprep.subr.mxu0 0.0
  %320 = vmatpush1.msra.mxu0 0.0
  %321 = vmatprep.subr.mxu0 0.0
  %322 = vmatpush1.msra.mxu0 0.0
  %323 = vmatprep.subr.mxu0 0.0
  %324 = vmatpush1.msra.mxu0 0.0
  %325 = vmatprep.subr.mxu0 0.0
  %326 = vmatpush1.msra.mxu0 0.0
  %327 = vmatprep.subr.mxu0 0.0
  %328 = vmatpush1.msra.mxu0 0.0
  %329 = vmatprep.subr.mxu0 0.0
  %330 = vmatpush1.msra.mxu0 0.0
  %331 = vmatprep.subr.mxu0 0.0
  %332 = vmatpush1.msra.mxu0 0.0
  %333 = vmatprep.subr.mxu0 0.0
  %334 = vmatpush1.msra.mxu0 0.0
  %335 = vmatprep.subr.mxu0 0.0
  %336 = vmatpush1.msra.mxu0 0.0
  %337 = vmatprep.subr.mxu0 0.0
  %338 = vmatpush1.msra.mxu0 0.0
  %339 = vmatprep.subr.mxu0 0.0
  %340 = vmatpush1.msra.mxu0 0.0
  %341 = vmatprep.subr.mxu0 0.0
  %342 = vmatpush1.msra.mxu0 0.0
  %343 = vmatprep.subr.mxu0 0.0
  %344 = vmatpush1.msra.mxu0 0.0
  %345 = vmatprep.subr.mxu0 0.0
  %346 = vmatpush1.msra.mxu0 0.0
  %347 = vmatprep.subr.mxu0 0.0
  %348 = vmatpush1.msra.mxu0 0.0
  %349 = vmatprep.subr.mxu0 0.0
  %350 = vmatpush1.msra.mxu0 0.0
  %351 = vmatprep.subr.mxu0 0.0
  %352 = vmatpush1.msra.mxu0 0.0
  %353 = vmatprep.subr.mxu0 0.0
  %354 = vmatpush1.msra.mxu0 0.0
  %355 = vmatprep.subr.mxu0 0.0
  %356 = vmatpush1.msra.mxu0 0.0
  %357 = vmatprep.subr.mxu0 0.0
  %358 = vmatpush1.msra.mxu0 0.0
  %359 = vmatprep.mubr.f32.mxu0 0.0
  %360 = vmatmul.mubr.f32.gmra.mrb[0].mxu0 %v284
  %v361 = vpop.f32.mrb[0].mxu0
  %v362 = vadd.f32 0.0, %v361
  %v363 = vpop.f32.mrb[0].mxu0
  %364 = vmatprep.mubr.f32.mxu0 0.0
  %365 = vmatmul.mubr.f32.gmra.mrb[0].mxu0 %v287
  %v366 = vpop.f32.mrb[0].mxu0
  %v367 = vadd.f32 0.0, %v366
  %v368 = vpop.f32.mrb[0].mxu0
  %369 = vmatprep.mubr.f32.mxu0 0.0
  %370 = vmatmul.mubr.f32.gmra.mrb[0].mxu0 %v290
  %v371 = vpop.f32.mrb[0].mxu0
  %v372 = vadd.f32 0.0, %v371
  %v373 = vpop.f32.mrb[0].mxu0
  %374 = vmatprep.mubr.f32.mxu0 0.0
  %375 = vmatmul.mubr.f32.gmra.mrb[0].mxu0 %v293
  %v376 = vpop.f32.mrb[0].mxu0
  %v377 = vadd.f32 0.0, %v376
  %v378 = vpop.f32.mrb[0].mxu0
  %379 = vdwg.mxu0
  %v380 = vadd.f32 %v252, %v362
  %v381 = vadd.f32 %v257, %v367
  %v382 = vadd.f32 %v262, %v372
  %v383 = vadd.f32 %v267, %v377
  %v384 = vld [vmem:[%s2] sm:$0x1]
  %v386 = vlaneseq
  %v387 = vshrl.u32 %v386, 7
  %v388 = vsub.s32 0, %v387
  %v389 = vrot.slane %v384, %v388
  %v391 = vadd.f32 %v380, %v389
  %v392 = vadd.f32 %v381, %v389
  %v393 = vadd.f32 %v382, %v389
  %v394 = vadd.f32 %v383, %v389
  %v395 = vmax.f32 %v391, 0.0
  %v396 = vmax.f32 %v392, 0.0
  %v397 = vmax.f32 %v393, 0.0
  %v398 = vmax.f32 %v394, 0.0
  %399 = vst.msk [vmem:[#allocation3 + $0x1] sm:$0xff] %vm46, %v395
  %400 = vst.msk [vmem:[#allocation3 + $0x9] sm:$0xff] %vm46, %v396
  %401 = vst.msk [vmem:[#allocation3 + $0x19] sm:$0xff] %vm46, %v397
  %402 = vst.msk [vmem:[#allocation3 + $0x21] sm:$0xff] %vm46, %v398
  %v403 = vld [vmem:[#allocation3] sm:$0xff]
  %v404 = vld [vmem:[#allocation3 + $0x8] sm:$0xff]
  %v405 = vld [vmem:[#allocation3 + $0x18] sm:$0xff]
  %v406 = vld [vmem:[#allocation3 + $0x20] sm:$0xff]
  %v407 = vld [vmem:[%s3] sm:$0xff]
  %v408 = vld [vmem:[%s3 + $0x8] sm:$0xff]
  %v409 = vld [vmem:[%s3 + $0x10] sm:$0xff]
  %v410 = vld [vmem:[%s3 + $0x18] sm:$0xff]
  %v411 = vld [vmem:[%s3 + $0x20] sm:$0xff]
  %v412 = vld [vmem:[%s3 + $0x28] sm:$0xff]
  %v413 = vld [vmem:[%s3 + $0x30] sm:$0xff]
  %v414 = vld [vmem:[%s3 + $0x38] sm:$0xff]
  %v415 = vld [vmem:[#allocation3 + $0x1] sm:$0xff]
  %v416 = vld [vmem:[#allocation3 + $0x9] sm:$0xff]
  %v417 = vld [vmem:[#allocation3 + $0x19] sm:$0xff]
  %v418 = vld [vmem:[#allocation3 + $0x21] sm:$0xff]
  %s419 = scalar_lea.vmem %s3, 64
  %v420 = vld [vmem:[%s419] sm:$0xff]
  %v421 = vld [vmem:[%s419 + $0x8] sm:$0xff]
  %v422 = vld [vmem:[%s419 + $0x10] sm:$0xff]
  %v423 = vld [vmem:[%s419 + $0x18] sm:$0xff]
  %v424 = vld [vmem:[%s419 + $0x20] sm:$0xff]
  %v425 = vld [vmem:[%s419 + $0x28] sm:$0xff]
  %v426 = vld [vmem:[%s419 + $0x30] sm:$0xff]
  %v427 = vld [vmem:[%s419 + $0x38] sm:$0xff]
  %v429 = vsel %vm46, %v415, 0
  %v432 = vsel %vm46, %v416, 0
  %v435 = vsel %vm46, %v417, 0
  %v438 = vsel %vm46, %v418, 0
  %440 = vmatprep.subr.mxu0 0.0
  %441 = vmatpush1.msra.mxu0 %v420
  %442 = vmatprep.subr.mxu0 0.0
  %443 = vmatpush1.msra.mxu0 %v421
  %444 = vmatprep.subr.mxu0 0.0
  %445 = vmatpush1.msra.mxu0 %v422
  %446 = vmatprep.subr.mxu0 0.0
  %447 = vmatpush1.msra.mxu0 %v423
  %448 = vmatprep.subr.mxu0 0.0
  %449 = vmatpush1.msra.mxu0 %v424
  %450 = vmatprep.subr.mxu0 0.0
  %451 = vmatpush1.msra.mxu0 %v425
  %452 = vmatprep.subr.mxu0 0.0
  %453 = vmatpush1.msra.mxu0 %v426
  %454 = vmatprep.subr.mxu0 0.0
  %455 = vmatpush1.msra.mxu0 %v427
  %456 = vmatprep.subr.mxu0 0.0
  %457 = vmatpush1.msra.mxu0 0.0
  %458 = vmatprep.subr.mxu0 0.0
  %459 = vmatpush1.msra.mxu0 0.0
  %460 = vmatprep.subr.mxu0 0.0
  %461 = vmatpush1.msra.mxu0 0.0
  %462 = vmatprep.subr.mxu0 0.0
  %463 = vmatpush1.msra.mxu0 0.0
  %464 = vmatprep.subr.mxu0 0.0
  %465 = vmatpush1.msra.mxu0 0.0
  %466 = vmatprep.subr.mxu0 0.0
  %467 = vmatpush1.msra.mxu0 0.0
  %468 = vmatprep.subr.mxu0 0.0
  %469 = vmatpush1.msra.mxu0 0.0
  %470 = vmatprep.subr.mxu0 0.0
  %471 = vmatpush1.msra.mxu0 0.0
  %472 = vmatprep.subr.mxu0 0.0
  %473 = vmatpush1.msra.mxu0 0.0
  %474 = vmatprep.subr.mxu0 0.0
  %475 = vmatpush1.msra.mxu0 0.0
  %476 = vmatprep.subr.mxu0 0.0
  %477 = vmatpush1.msra.mxu0 0.0
  %478 = vmatprep.subr.mxu0 0.0
  %479 = vmatpush1.msra.mxu0 0.0
  %480 = vmatprep.subr.mxu0 0.0
  %481 = vmatpush1.msra.mxu0 0.0
  %482 = vmatprep.subr.mxu0 0.0
  %483 = vmatpush1.msra.mxu0 0.0
  %484 = vmatprep.subr.mxu0 0.0
  %485 = vmatpush1.msra.mxu0 0.0
  %486 = vmatprep.subr.mxu0 0.0
  %487 = vmatpush1.msra.mxu0 0.0
  %488 = vmatprep.subr.mxu0 0.0
  %489 = vmatpush1.msra.mxu0 0.0
  %490 = vmatprep.subr.mxu0 0.0
  %491 = vmatpush1.msra.mxu0 0.0
  %492 = vmatprep.subr.mxu0 0.0
  %493 = vmatpush1.msra.mxu0 0.0
  %494 = vmatprep.subr.mxu0 0.0
  %495 = vmatpush1.msra.mxu0 0.0
  %496 = vmatprep.subr.mxu0 0.0
  %497 = vmatpush1.msra.mxu0 0.0
  %498 = vmatprep.subr.mxu0 0.0
  %499 = vmatpush1.msra.mxu0 0.0
  %500 = vmatprep.subr.mxu0 0.0
  %501 = vmatpush1.msra.mxu0 0.0
  %502 = vmatprep.subr.mxu0 0.0
  %503 = vmatpush1.msra.mxu0 0.0
  %504 = vmatprep.mubr.f32.mxu0 0.0
  %505 = vmatmul.mubr.f32.gmra.mrb[0].mxu0 %v429
  %v506 = vpop.f32.mrb[0].mxu0
  %v507 = vadd.f32 0.0, %v506
  %v508 = vpop.f32.mrb[0].mxu0
  %509 = vmatprep.mubr.f32.mxu0 0.0
  %510 = vmatmul.mubr.f32.gmra.mrb[0].mxu0 %v432
  %v511 = vpop.f32.mrb[0].mxu0
  %v512 = vadd.f32 0.0, %v511
  %v513 = vpop.f32.mrb[0].mxu0
  %514 = vmatprep.mubr.f32.mxu0 0.0
  %515 = vmatmul.mubr.f32.gmra.mrb[0].mxu0 %v435
  %v516 = vpop.f32.mrb[0].mxu0
  %v517 = vadd.f32 0.0, %v516
  %v518 = vpop.f32.mrb[0].mxu0
  %519 = vmatprep.mubr.f32.mxu0 0.0
  %520 = vmatmul.mubr.f32.gmra.mrb[0].mxu0 %v438
  %v521 = vpop.f32.mrb[0].mxu0
  %v522 = vadd.f32 0.0, %v521
  %v523 = vpop.f32.mrb[0].mxu0
  %524 = vdwg.mxu0
  %v526 = vsel %vm46, %v403, 0
  %v529 = vsel %vm46, %v404, 0
  %v532 = vsel %vm46, %v405, 0
  %v535 = vsel %vm46, %v406, 0
  %537 = vmatprep.subr.mxu0 0.0
  %538 = vmatpush1.msra.mxu0 %v407
  %539 = vmatprep.subr.mxu0 0.0
  %540 = vmatpush1.msra.mxu0 %v408
  %541 = vmatprep.subr.mxu0 0.0
  %542 = vmatpush1.msra.mxu0 %v409
  %543 = vmatprep.subr.mxu0 0.0
  %544 = vmatpush1.msra.mxu0 %v410
  %545 = vmatprep.subr.mxu0 0.0
  %546 = vmatpush1.msra.mxu0 %v411
  %547 = vmatprep.subr.mxu0 0.0
  %548 = vmatpush1.msra.mxu0 %v412
  %549 = vmatprep.subr.mxu0 0.0
  %550 = vmatpush1.msra.mxu0 %v413
  %551 = vmatprep.subr.mxu0 0.0
  %552 = vmatpush1.msra.mxu0 %v414
  %553 = vmatprep.subr.mxu0 0.0
  %554 = vmatpush1.msra.mxu0 0.0
  %555 = vmatprep.subr.mxu0 0.0
  %556 = vmatpush1.msra.mxu0 0.0
  %557 = vmatprep.subr.mxu0 0.0
  %558 = vmatpush1.msra.mxu0 0.0
  %559 = vmatprep.subr.mxu0 0.0
  %560 = vmatpush1.msra.mxu0 0.0
  %561 = vmatprep.subr.mxu0 0.0
  %562 = vmatpush1.msra.mxu0 0.0
  %563 = vmatprep.subr.mxu0 0.0
  %564 = vmatpush1.msra.mxu0 0.0
  %565 = vmatprep.subr.mxu0 0.0
  %566 = vmatpush1.msra.mxu0 0.0
  %567 = vmatprep.subr.mxu0 0.0
  %568 = vmatpush1.msra.mxu0 0.0
  %569 = vmatprep.subr.mxu0 0.0
  %570 = vmatpush1.msra.mxu0 0.0
  %571 = vmatprep.subr.mxu0 0.0
  %572 = vmatpush1.msra.mxu0 0.0
  %573 = vmatprep.subr.mxu0 0.0
  %574 = vmatpush1.msra.mxu0 0.0
  %575 = vmatprep.subr.mxu0 0.0
  %576 = vmatpush1.msra.mxu0 0.0
  %577 = vmatprep.subr.mxu0 0.0
  %578 = vmatpush1.msra.mxu0 0.0
  %579 = vmatprep.subr.mxu0 0.0
  %580 = vmatpush1.msra.mxu0 0.0
  %581 = vmatprep.subr.mxu0 0.0
  %582 = vmatpush1.msra.mxu0 0.0
  %583 = vmatprep.subr.mxu0 0.0
  %584 = vmatpush1.msra.mxu0 0.0
  %585 = vmatprep.subr.mxu0 0.0
  %586 = vmatpush1.msra.mxu0 0.0
  %587 = vmatprep.subr.mxu0 0.0
  %588 = vmatpush1.msra.mxu0 0.0
  %589 = vmatprep.subr.mxu0 0.0
  %590 = vmatpush1.msra.mxu0 0.0
  %591 = vmatprep.subr.mxu0 0.0
  %592 = vmatpush1.msra.mxu0 0.0
  %593 = vmatprep.subr.mxu0 0.0
  %594 = vmatpush1.msra.mxu0 0.0
  %595 = vmatprep.subr.mxu0 0.0
  %596 = vmatpush1.msra.mxu0 0.0
  %597 = vmatprep.subr.mxu0 0.0
  %598 = vmatpush1.msra.mxu0 0.0
  %599 = vmatprep.subr.mxu0 0.0
  %600 = vmatpush1.msra.mxu0 0.0
  %601 = vmatprep.mubr.f32.mxu0 0.0
  %602 = vmatmul.mubr.f32.gmra.mrb[0].mxu0 %v526
  %v603 = vpop.f32.mrb[0].mxu0
  %v604 = vadd.f32 %v507, %v603
  %v605 = vpop.f32.mrb[0].mxu0
  %606 = vmatprep.mubr.f32.mxu0 0.0
  %607 = vmatmul.mubr.f32.gmra.mrb[0].mxu0 %v529
  %v608 = vpop.f32.mrb[0].mxu0
  %v609 = vadd.f32 %v512, %v608
  %v610 = vpop.f32.mrb[0].mxu0
  %611 = vmatprep.mubr.f32.mxu0 0.0
  %612 = vmatmul.mubr.f32.gmra.mrb[0].mxu0 %v532
  %v613 = vpop.f32.mrb[0].mxu0
  %v614 = vadd.f32 %v517, %v613
  %v615 = vpop.f32.mrb[0].mxu0
  %616 = vmatprep.mubr.f32.mxu0 0.0
  %617 = vmatmul.mubr.f32.gmra.mrb[0].mxu0 %v535
  %v618 = vpop.f32.mrb[0].mxu0
  %v619 = vadd.f32 %v522, %v618
  %v620 = vpop.f32.mrb[0].mxu0
  %621 = vdwg.mxu0
  %v622 = vld [vmem:[#allocation3 + $0x2] sm:$0xff]
  %v623 = vld [vmem:[#allocation3 + $0xa] sm:$0xff]
  %v624 = vld [vmem:[#allocation3 + $0x1a] sm:$0xff]
  %v625 = vld [vmem:[#allocation3 + $0x22] sm:$0xff]
  %s626 = scalar_lea.vmem %s3, 128
  %v627 = vld [vmem:[%s626] sm:$0xff]
  %v628 = vld [vmem:[%s626 + $0x8] sm:$0xff]
  %v629 = vld [vmem:[%s626 + $0x10] sm:$0xff]
  %v630 = vld [vmem:[%s626 + $0x18] sm:$0xff]
  %v631 = vld [vmem:[%s626 + $0x20] sm:$0xff]
  %v632 = vld [vmem:[%s626 + $0x28] sm:$0xff]
  %v633 = vld [vmem:[%s626 + $0x30] sm:$0xff]
  %v634 = vld [vmem:[%s626 + $0x38] sm:$0xff]
  %v636 = vsel %vm46, %v622, 0
  %v639 = vsel %vm46, %v623, 0
  %v642 = vsel %vm46, %v624, 0
  %v645 = vsel %vm46, %v625, 0
  %647 = vmatprep.subr.mxu0 0.0
  %648 = vmatpush1.msra.mxu0 %v627
  %649 = vmatprep.subr.mxu0 0.0
  %650 = vmatpush1.msra.mxu0 %v628
  %651 = vmatprep.subr.mxu0 0.0
  %652 = vmatpush1.msra.mxu0 %v629
  %653 = vmatprep.subr.mxu0 0.0
  %654 = vmatpush1.msra.mxu0 %v630
  %655 = vmatprep.subr.mxu0 0.0
  %656 = vmatpush1.msra.mxu0 %v631
  %657 = vmatprep.subr.mxu0 0.0
  %658 = vmatpush1.msra.mxu0 %v632
  %659 = vmatprep.subr.mxu0 0.0
  %660 = vmatpush1.msra.mxu0 %v633
  %661 = vmatprep.subr.mxu0 0.0
  %662 = vmatpush1.msra.mxu0 %v634
  %663 = vmatprep.subr.mxu0 0.0
  %664 = vmatpush1.msra.mxu0 0.0
  %665 = vmatprep.subr.mxu0 0.0
  %666 = vmatpush1.msra.mxu0 0.0
  %667 = vmatprep.subr.mxu0 0.0
  %668 = vmatpush1.msra.mxu0 0.0
  %669 = vmatprep.subr.mxu0 0.0
  %670 = vmatpush1.msra.mxu0 0.0
  %671 = vmatprep.subr.mxu0 0.0
  %672 = vmatpush1.msra.mxu0 0.0
  %673 = vmatprep.subr.mxu0 0.0
  %674 = vmatpush1.msra.mxu0 0.0
  %675 = vmatprep.subr.mxu0 0.0
  %676 = vmatpush1.msra.mxu0 0.0
  %677 = vmatprep.subr.mxu0 0.0
  %678 = vmatpush1.msra.mxu0 0.0
  %679 = vmatprep.subr.mxu0 0.0
  %680 = vmatpush1.msra.mxu0 0.0
  %681 = vmatprep.subr.mxu0 0.0
  %682 = vmatpush1.msra.mxu0 0.0
  %683 = vmatprep.subr.mxu0 0.0
  %684 = vmatpush1.msra.mxu0 0.0
  %685 = vmatprep.subr.mxu0 0.0
  %686 = vmatpush1.msra.mxu0 0.0
  %687 = vmatprep.subr.mxu0 0.0
  %688 = vmatpush1.msra.mxu0 0.0
  %689 = vmatprep.subr.mxu0 0.0
  %690 = vmatpush1.msra.mxu0 0.0
  %691 = vmatprep.subr.mxu0 0.0
  %692 = vmatpush1.msra.mxu0 0.0
  %693 = vmatprep.subr.mxu0 0.0
  %694 = vmatpush1.msra.mxu0 0.0
  %695 = vmatprep.subr.mxu0 0.0
  %696 = vmatpush1.msra.mxu0 0.0
  %697 = vmatprep.subr.mxu0 0.0
  %698 = vmatpush1.msra.mxu0 0.0
  %699 = vmatprep.subr.mxu0 0.0
  %700 = vmatpush1.msra.mxu0 0.0
  %701 = vmatprep.subr.mxu0 0.0
  %702 = vmatpush1.msra.mxu0 0.0
  %703 = vmatprep.subr.mxu0 0.0
  %704 = vmatpush1.msra.mxu0 0.0
  %705 = vmatprep.subr.mxu0 0.0
  %706 = vmatpush1.msra.mxu0 0.0
  %707 = vmatprep.subr.mxu0 0.0
  %708 = vmatpush1.msra.mxu0 0.0
  %709 = vmatprep.subr.mxu0 0.0
  %710 = vmatpush1.msra.mxu0 0.0
  %711 = vmatprep.mubr.f32.mxu0 0.0
  %712 = vmatmul.mubr.f32.gmra.mrb[0].mxu0 %v636
  %v713 = vpop.f32.mrb[0].mxu0
  %v714 = vadd.f32 0.0, %v713
  %v715 = vpop.f32.mrb[0].mxu0
  %716 = vmatprep.mubr.f32.mxu0 0.0
  %717 = vmatmul.mubr.f32.gmra.mrb[0].mxu0 %v639
  %v718 = vpop.f32.mrb[0].mxu0
  %v719 = vadd.f32 0.0, %v718
  %v720 = vpop.f32.mrb[0].mxu0
  %721 = vmatprep.mubr.f32.mxu0 0.0
  %722 = vmatmul.mubr.f32.gmra.mrb[0].mxu0 %v642
  %v723 = vpop.f32.mrb[0].mxu0
  %v724 = vadd.f32 0.0, %v723
  %v725 = vpop.f32.mrb[0].mxu0
  %726 = vmatprep.mubr.f32.mxu0 0.0
  %727 = vmatmul.mubr.f32.gmra.mrb[0].mxu0 %v645
  %v728 = vpop.f32.mrb[0].mxu0
  %v729 = vadd.f32 0.0, %v728
  %v730 = vpop.f32.mrb[0].mxu0
  %731 = vdwg.mxu0
  %v732 = vadd.f32 %v604, %v714
  %v733 = vadd.f32 %v609, %v719
  %v734 = vadd.f32 %v614, %v724
  %v735 = vadd.f32 %v619, %v729
  %v736 = vld [vmem:[%s4] sm:$0x1]
  %v738 = vlaneseq
  %v739 = vshrl.u32 %v738, 7
  %v740 = vsub.s32 0, %v739
  %v741 = vrot.slane %v736, %v740
  %v743 = vadd.f32 %v732, %v741
  %v744 = vadd.f32 %v733, %v741
  %v745 = vadd.f32 %v734, %v741
  %v746 = vadd.f32 %v735, %v741
  %v747 = vadd.f32 %v743, %v38
  %v748 = vadd.f32 %v744, %v39
  %v749 = vadd.f32 %v745, %v40
  %v750 = vadd.f32 %v746, %v41
  %751 = vst.msk [vmem:[%s5] sm:$0xff] %vm46, %v747
  %752 = vst.msk [vmem:[%s5 + $0x8] sm:$0xff] %vm46, %v748
  %753 = vst.msk [vmem:[%s5 + $0x10] sm:$0xff] %vm46, %v749
  %754 = vst.msk [vmem:[%s5 + $0x18] sm:$0xff] %vm46, %v750
  // Predicated region
  $region26: #{basic_block_forward.1} parent=0 // pred_check
    _
  $region27: #{basic_block_forward.1} parent=0 // pred_check_branch
    %756 = sbr.rel (0) target = $region29
  $region28: #{basic_block_forward.1} parent=0 // pred_region
    _
  $region29: #{basic_block_forward.1} parent=0 // pred_fallthru
    _
  // Predicated region
  $region30: #{basic_block_forward.1} parent=0 // pred_check
    _
  $region31: #{basic_block_forward.1} parent=0 // pred_check_branch
    %758 = sbr.rel (0) target = $region33
  $region32: #{basic_block_forward.1} parent=0 // pred_region
    _
  $region33: #{basic_block_forward.1} parent=0 // pred_fallthru
    _

</llo_original>
